<compile_context>
chip_gen: v7x
topology: tpu7x:2x2x1
jax: 0.10.0
libtpu: 0.0.40
codegen_flags: <defaults>
</compile_context>

<pallas_src>
import functools

import jax
import jax.numpy as jnp
from jax import lax
from jax.experimental import pallas as pl
from jax.experimental.pallas import tpu as pltpu

_LANES = 128
_CHUNK_ROWS = 256  # in-block strip-mine unit: 32 f32 vregs per operand


def _device_kind():
    try:
        return jax.devices()[0].device_kind.lower()
    except Exception:
        return ""


def _num_core_splits():
    """2 only on chips whose Pallas device exposes two TensorCores."""
    kind = _device_kind()
    if ("v5p" in kind) or ("v7" in kind) or ("v4" in kind and "lite" not in kind):
        return 2
    return 1


def _target_block_bytes():
    """Per-input-buffer DMA block size target."""
    kind = _device_kind()
    if ("v6" in kind) or ("v7" in kind):
        return 4 * 1024 * 1024  # 32 MiB scoped-VMEM default: 2 in x 2 buf = 16 MiB
    return 2 * 1024 * 1024      # v5e & older: stay well under the 16 MiB default


def _fold_to_8x128(sq):
    """Fold an (n, 128) f32 tile of squared diffs into (8, 128) partial sums."""
    n = sq.shape[0]
    if n % 8 == 0:
        # Layout-friendly: sum groups of 8 sublanes -> pure VPU vector adds.
        return sq.reshape(n // 8, 8, _LANES).sum(axis=0)
    # Tiny-input fallback (n < 8): one sublane reduce, placed in row 0.
    row = jnp.sum(sq, axis=0, keepdims=True)
    return jnp.concatenate([row, jnp.zeros((7, _LANES), jnp.float32)], axis=0)


def _plan_tiles(rows, sublane_mult, cap_rows, ncores_hw):
    """Pick (ncores, blocks_per_core, block_rows).

    block_rows is sublane-aligned and (when > _CHUNK_ROWS) a multiple of
    _CHUNK_ROWS so the in-kernel strip-mine loop divides evenly.  The 2-core
    split is balanced so no core is given a duplicate/ghost block.
    """
    def round_up(n, m):
        return ((n + m - 1) // m) * m

    if ncores_hw > 1 and rows > sublane_mult:
        ncores = ncores_hw
        nblocks0 = max(1, pl.cdiv(rows, cap_rows))
        bpc = pl.cdiv(nblocks0, ncores)
        br = round_up(pl.cdiv(rows, ncores * bpc), sublane_mult)
        if br > _CHUNK_ROWS:
            br = round_up(br, _CHUNK_ROWS)
        br = min(br, cap_rows)
        # All cores except the last must be fully in-bounds (no ghost blocks).
        if (ncores - 1) * bpc * br < rows:
            return ncores, bpc, br

    # Single-core plan.
    if rows < sublane_mult:
        return 1, 1, rows  # full-extent block for tiny inputs
    br = (rows // sublane_mult) * sublane_mult
    if br > _CHUNK_ROWS:
        br = (br // _CHUNK_ROWS) * _CHUNK_ROWS
    br = min(br, cap_rows)
    return 1, pl.cdiv(rows, br), br


def _mse_kernel(a_ref, b_ref, o_ref, *, block_rows, chunk_rows, blocks_per_core,
                rows_total, edge_possible):
    p = pl.program_id(0)  # core-split axis ("parallel")
    i = pl.program_id(1)  # reduction axis ("arbitrary")

    @pl.when(i == 0)
    def _():
        o_ref[...] = jnp.zeros_like(o_ref)

    row0 = (p * blocks_per_core + i) * block_rows  # global first row of the block
    nchunks = block_rows // chunk_rows

    def tile_sum(a, b, base_row, masked):
        d = a.astype(jnp.float32) - b.astype(jnp.float32)
        sq = d * d
        if masked:
            # Rows past the true end of the array (partial last block / clamped
            # ghost blocks) contribute 0.  Only edge blocks take this path.
            local = lax.broadcasted_iota(jnp.int32, sq.shape, 0)
            sq = jnp.where(base_row + local < rows_total, sq, 0.0)
        return _fold_to_8x128(sq)

    def block_sum(masked):
        if nchunks == 1:
            return tile_sum(a_ref[...], b_ref[...], row0, masked)

        def body(c, acc):
            r = pl.multiple_of(c * chunk_rows, chunk_rows)
            return acc + tile_sum(a_ref[pl.ds(r, chunk_rows), :],
                                  b_ref[pl.ds(r, chunk_rows), :],
                                  row0 + r, masked)

        return lax.fori_loop(0, nchunks, body,
                             jnp.zeros((8, _LANES), jnp.float32))

    if edge_possible:
        is_edge = row0 + block_rows > rows_total
        @pl.when(jnp.logical_not(is_edge))
        def _():
            o_ref[...] += block_sum(False)
        @pl.when(is_edge)
        def _():
            o_ref[...] += block_sum(True)
    else:
        o_ref[...] += block_sum(False)


def mse_loss(y_hat, y):
    """Returns {'loss': scalar f32}, matching nn.MSELoss() default 'mean' reduction."""
    assert y_hat.shape == y.shape, "MSELoss with default args requires equal shapes"
    count = int(y.size)
    assert count > 0

    if y_hat.dtype != y.dtype:
        ct = jnp.promote_types(y_hat.dtype, y.dtype)
        y_hat = y_hat.astype(ct)
        y = y.astype(ct)

    flat_a = jnp.ravel(y_hat)  # contiguous ravel: no HBM copy
    flat_b = jnp.ravel(y)

    rows = count // _LANES
    rem = count - rows * _LANES

    # <=127-element unaligned tail: tiny plain-JAX reduction (no jnp.pad of the
    # full inputs).
    tail_sum = jnp.float32(0.0)
    if rem:
        ta = flat_a[rows * _LANES:].astype(jnp.float32)
        tb = flat_b[rows * _LANES:].astype(jnp.float32)
        tail_sum = jnp.sum((ta - tb) ** 2)

    if rows == 0:
        # Fewer than 128 elements total: not worth a kernel launch.
        return {"loss": tail_sum / count}

    if rem:
        # TODO(synk): XLA still materializes a copy for this prefix slice; the
        # common lane-aligned case takes the zero-copy path below.
        flat_a = flat_a[: rows * _LANES]
        flat_b = flat_b[: rows * _LANES]
    a2d = flat_a.reshape(rows, _LANES)
    b2d = flat_b.reshape(rows, _LANES)

    itemsize = jnp.dtype(a2d.dtype).itemsize
    sublane_mult = 8 * max(1, 4 // itemsize)  # 8 f32 / 16 bf16 / 32 int8
    cap_rows = max(sublane_mult, _target_block_bytes() // (_LANES * itemsize))

    ncores, blocks_per_core, block_rows = _plan_tiles(
        rows, sublane_mult, cap_rows, _num_core_splits())

    slots = ncores * blocks_per_core
    nblocks = pl.cdiv(rows, block_rows)
    edge_possible = (slots * block_rows) != rows
    chunk_rows = (_CHUNK_ROWS
                  if (block_rows > _CHUNK_ROWS and block_rows % _CHUNK_ROWS == 0)
                  else block_rows)

    if slots > nblocks:
        # Safety net (the planner avoids this): clamp ghost blocks onto the last
        # real block; the gated edge mask zeroes their contribution.
        in_idx = lambda p, i: (jnp.minimum(p * blocks_per_core + i, nblocks - 1), 0)
    else:
        in_idx = lambda p, i: (p * blocks_per_core + i, 0)

    kernel = functools.partial(
        _mse_kernel,
        block_rows=block_rows,
        chunk_rows=chunk_rows,
        blocks_per_core=blocks_per_core,
        rows_total=rows,
        edge_possible=edge_possible,
    )

    partials = pl.pallas_call(
        kernel,
        out_shape=jax.ShapeDtypeStruct((8, ncores * _LANES), jnp.float32),
        grid_spec=pltpu.PrefetchScalarGridSpec(
            num_scalar_prefetch=0,
            grid=(ncores, blocks_per_core),
            in_specs=[
                pl.BlockSpec((block_rows, _LANES), in_idx),
                pl.BlockSpec((block_rows, _LANES), in_idx),
            ],
            out_specs=pl.BlockSpec((8, _LANES), lambda p, i: (0, p)),
        ),
        compiler_params=pltpu.CompilerParams(
            dimension_semantics=("parallel", "arbitrary"),
        ),
        cost_estimate=pl.CostEstimate(
            flops=3 * rows * _LANES,
            transcendentals=0,
            bytes_accessed=2 * rows * _LANES * itemsize + 4 * 8 * ncores * _LANES,
        ),
    )(a2d, b2d)

    loss = (jnp.sum(partials) + tail_sum) / count
    return {"loss": loss}


if __name__ == "__main__":
    key = jax.random.PRNGKey(0)
    k1, k2, k3, k4 = jax.random.split(key, 4)

    # Primary check: NCHW f32, lane-aligned (zero-copy path, no masking).
    y_hat = jax.random.normal(k1, (2, 4, 16, 16), dtype=jnp.float32)
    y = jax.random.normal(k2, (2, 4, 16, 16), dtype=jnp.float32)
    out = mse_loss(y_hat, y)
    loss = jax.block_until_ready(out["loss"])
    ref = jnp.mean((y_hat - y) ** 2)
    assert jnp.allclose(loss, ref, rtol=1e-5, atol=1e-6), (loss, ref)

    # Second check: bf16, unaligned total -> plain-JAX tail + gated in-kernel
    # edge masking on the partial last block.
    y_hat2 = jax.random.normal(k3, (2, 4, 50, 50), dtype=jnp.bfloat16)
    y2 = jax.random.normal(k4, (2, 4, 50, 50), dtype=jnp.bfloat16)
    out2 = mse_loss(y_hat2, y2)
    loss2 = jax.block_until_ready(out2["loss"])
    ref2 = jnp.mean((y_hat2.astype(jnp.float32) - y2.astype(jnp.float32)) ** 2)
    assert jnp.allclose(loss2, ref2, rtol=1e-5, atol=1e-6), (loss2, ref2)

    print("KERNEL_OK")
</pallas_src>

<mosaic_0001>
module attributes {stable_mosaic.version = 11 : i64} {
  func.func @_mse_kernel(%arg0: i32, %arg1: i32, %arg2: memref<16x128xf32, #tpu.memory_space<vmem>>, %arg3: memref<16x128xf32, #tpu.memory_space<vmem>>, %arg4: memref<8x128xf32, #tpu.memory_space<vmem>>) attributes {dimension_semantics = [#tpu.dimension_semantics<parallel>, #tpu.dimension_semantics<arbitrary>], iteration_bounds = array<i64: 1, 1>, scalar_prefetch = 0 : i64, scratch_operands = 0 : i64, tpu.core_type = #tpu.core_type<tc>, window_params = [{transform_indices = @transform_0, window_bounds = array<i64: 16, 128>}, {transform_indices = @transform_1, window_bounds = array<i64: 16, 128>}, {transform_indices = @transform_2, window_bounds = array<i64: 8, 128>}]} {
    %c0_i32 = arith.constant 0 : i32
    %0 = arith.cmpi eq, %arg1, %c0_i32 : i32
    %1 = arith.extui %0 : i1 to i32
    %c0_i32_0 = arith.constant 0 : i32
    %2 = arith.cmpi ne, %1, %c0_i32_0 : i32
    scf.if %2 {
      %cst_8 = arith.constant 0.000000e+00 : f32
      %12 = vector.broadcast %cst_8 : f32 to vector<8x128xf32>
      %c0_9 = arith.constant 0 : index
      %c0_10 = arith.constant 0 : index
      %13 = vector.load %arg4[%c0_9, %c0_10] : memref<8x128xf32, #tpu.memory_space<vmem>>, vector<8x128xf32>
      tpu.vector_store %arg4[%c0_9, %c0_10], %12 {strides = array<i32>} : memref<8x128xf32, #tpu.memory_space<vmem>>, vector<8x128xf32>,
    } else {
    }
    %c0 = arith.constant 0 : index
    %c0_1 = arith.constant 0 : index
    %3 = vector.load %arg4[%c0, %c0_1] : memref<8x128xf32, #tpu.memory_space<vmem>>, vector<8x128xf32>
    %c0_2 = arith.constant 0 : index
    %c0_3 = arith.constant 0 : index
    %4 = vector.load %arg2[%c0_2, %c0_3] : memref<16x128xf32, #tpu.memory_space<vmem>>, vector<16x128xf32>
    %c0_4 = arith.constant 0 : index
    %c0_5 = arith.constant 0 : index
    %5 = vector.load %arg3[%c0_4, %c0_5] : memref<16x128xf32, #tpu.memory_space<vmem>>, vector<16x128xf32>
    %6 = arith.subf %4, %5 : vector<16x128xf32>
    %7 = arith.mulf %6, %6 : vector<16x128xf32>
    %8 = vector.shape_cast %7 : vector<16x128xf32> to vector<2x8x128xf32>
    %cst = arith.constant dense<0.000000e+00> : vector<8x128xf32>
    %9 = vector.multi_reduction <add>, %8, %cst [0] : vector<2x8x128xf32> to vector<8x128xf32>
    %10 = arith.addf %3, %9 : vector<8x128xf32>
    %c0_6 = arith.constant 0 : index
    %c0_7 = arith.constant 0 : index
    %11 = vector.load %arg4[%c0_6, %c0_7] : memref<8x128xf32, #tpu.memory_space<vmem>>, vector<8x128xf32>
    tpu.vector_store %arg4[%c0_6, %c0_7], %10 {strides = array<i32>} : memref<8x128xf32, #tpu.memory_space<vmem>>, vector<8x128xf32>,
    return
  }
  func.func @transform_0(%arg0: i32, %arg1: i32) -> (i32, i32) {
    %c1_i32 = arith.constant 1 : i32
    %0 = arith.muli %arg0, %c1_i32 : i32
    %1 = arith.addi %0, %arg1 : i32
    %c0_i32 = arith.constant 0 : i32
    %c0_i32_0 = arith.constant 0 : i32
    return %1, %c0_i32 : i32, i32
  }
  func.func @transform_1(%arg0: i32, %arg1: i32) -> (i32, i32) {
    %c1_i32 = arith.constant 1 : i32
    %0 = arith.muli %arg0, %c1_i32 : i32
    %1 = arith.addi %0, %arg1 : i32
    %c0_i32 = arith.constant 0 : i32
    %c0_i32_0 = arith.constant 0 : i32
    return %1, %c0_i32 : i32, i32
  }
  func.func @transform_2(%arg0: i32, %arg1: i32) -> (i32, i32) {
    %c0_i32 = arith.constant 0 : i32
    %c0_i32_0 = arith.constant 0 : i32
    return %c0_i32, %arg0 : i32, i32
  }
}

</mosaic_0001>

<llo_original>
// kernel: tpu_custom_call.1
$region0: #{tpu_custom_call.1}
  #allocation0 [shape = 'u32[]', space=smem, size = 0x4, offset = 0x4, fixed_abs, tag = 'smem constant byte address 0x4 - core index']
  #allocation1 [shape = 'u32[144,128]{1,0:T(1,128)}', space=vmem, size = 0x12000, scoped, tag = 'internal scratch']
  %s0 = inlined_call_operand.hbm [shape: f32[16,128], index: 0, kind: input, shape index: {}]
  %s1 = inlined_call_operand.hbm [shape: f32[16,128], index: 1, kind: input, shape index: {}]
  %s2 = inlined_call_operand.hbm [shape: f32[8,128], index: 2, kind: output, shape index: {}]
  %s3 = sld [smem:[#allocation0]]
  $region30: #{tpu_custom_call.1} parent=0
    _
  %s5 = ssub.s32 1, %s3
  %s6 = scalar_select 0, %s5, %s3
  $region1: #{tpu_custom_call.1} parent=0
    #allocation2 [shape = 'u8[8192]{0}', space=vmem, size = 0x2000, scoped, tag = 'input window, operand 0, single buffered']
    #allocation3 [shape = 's32[1]{0}', space=sflag, size = 0x4, scoped, tag = 'scoped memory for tpu_custom_call.1']
    #allocation4 [shape = 's32[1]{0}', space=sflag, size = 0x4, scoped, tag = 'scoped memory for tpu_custom_call.1']
    #allocation5 [shape = 'u8[8192]{0}', space=vmem, size = 0x2000, scoped, tag = 'input window, operand 1, single buffered']
    #allocation6 [shape = 's32[1]{0}', space=sflag, size = 0x4, scoped, tag = 'scoped memory for tpu_custom_call.1']
    #allocation7 [shape = 'u8[4096]{0}', space=vmem, size = 0x1000, scoped, tag = 'output window, operand 0, single buffered']
    %7 = vsyncpa [#allocation3], 0
    %8 = vsyncpa [#allocation6], 0
    %9 = vsyncpa [#allocation4], 0
    // Predicated region
    $region2: #{tpu_custom_call.1} parent=1 // pred_check
      _
    $region3: #{tpu_custom_call.1} parent=1 // pred_check_branch
      %11 = sbr.rel (0) target = $region5
    $region4: #{tpu_custom_call.1} parent=1 // pred_region
      %s12 = sadd.s32 0, 0
      %s13 = smul.u32 2, %s12
      %s15 = ssub.s32 256, 256
      %16 = vsyncadd [#allocation3], %s15
      %s17 = smul.addr %s13, 128
      %s18 = scalar_lea.hbm %s0, %s17
      %s19 = sshll.u32 [#allocation2], 4
      %s20 = int_to_ptr.vmem [resolvable:$true] %s19
      %25 = dma.hbm_to_vmem [thread:$0]  %s18, 256, %s20, [#allocation3], 128, 128, 8
    $region5: #{tpu_custom_call.1} parent=1 // pred_fallthru
      _
    // Predicated region
    $region6: #{tpu_custom_call.1} parent=1 // pred_check
      _
    $region7: #{tpu_custom_call.1} parent=1 // pred_check_branch
      %27 = sbr.rel (0) target = $region9
    $region8: #{tpu_custom_call.1} parent=1 // pred_region
      %s28 = sadd.s32 0, 0
      %s29 = smul.u32 2, %s28
      %s31 = ssub.s32 256, 256
      %32 = vsyncadd [#allocation6], %s31
      %s33 = smul.addr %s29, 128
      %s34 = scalar_lea.hbm %s1, %s33
      %s35 = sshll.u32 [#allocation5], 4
      %s36 = int_to_ptr.vmem [resolvable:$true] %s35
      %41 = dma.hbm_to_vmem [thread:$0]  %s34, 256, %s36, [#allocation6], 128, 128, 8
    $region9: #{tpu_custom_call.1} parent=1 // pred_fallthru
      _
    // Predicated region
    $region10: #{tpu_custom_call.1} parent=1 // pred_check
      _
    $region11: #{tpu_custom_call.1} parent=1 // pred_check_branch
      %43 = sbr.rel (0) target = $region13
    $region12: #{tpu_custom_call.1} parent=1 // pred_region
      %44 = dma.done [#allocation3], 256
    $region13: #{tpu_custom_call.1} parent=1 // pred_fallthru
      _
    // Predicated region
    $region14: #{tpu_custom_call.1} parent=1 // pred_check
      _
    $region15: #{tpu_custom_call.1} parent=1 // pred_check_branch
      %46 = sbr.rel (0) target = $region17
    $region16: #{tpu_custom_call.1} parent=1 // pred_region
      %47 = dma.done [#allocation6], 256
    $region17: #{tpu_custom_call.1} parent=1 // pred_fallthru
      _
    %s48 = sadd.s32 0, 0
    %s49 = smul.u32 2, %s48
    %s50 = sadd.s32 0, 0
    %s51 = smul.u32 2, %s50
    %p52 = scmp.eq.s32.totalorder 0, 0
    // Predicated region
    $region18: #{tpu_custom_call.1} parent=1 // pred_check
      %p53 = pneg %p52
    $region19: #{tpu_custom_call.1} parent=1 // pred_check_branch
      %55 = sbr.rel (%p53) target = $region21
    $region20: #{tpu_custom_call.1} parent=1 // pred_region
      %56 = vst [vmem:[#allocation7] sm:$0xff] 0.0
    $region21: #{tpu_custom_call.1} parent=1 // pred_fallthru
      _
    %v57 = vld [vmem:[#allocation7] sm:$0xff]
    %v58 = vld [vmem:[#allocation2] sm:$0xff]
    %v59 = vld [vmem:[#allocation2 + $0x8] sm:$0xff]
    %v60 = vld [vmem:[#allocation5] sm:$0xff]
    %v61 = vld [vmem:[#allocation5 + $0x8] sm:$0xff]
    %v62 = vsub.f32 %v58, %v60
    %v63 = vsub.f32 %v59, %v61
    %v64 = vmul.f32 %v62, %v62
    %v65 = vmul.f32 %v63, %v63
    %v66 = vadd.f32 %v64, %v65
    %v67 = vadd.f32 %v57, %v66
    %68 = vst [vmem:[#allocation7] sm:$0xff] %v67
    // Predicated region
    $region22: #{tpu_custom_call.1} parent=1 // pred_check
      _
    $region23: #{tpu_custom_call.1} parent=1 // pred_check_branch
      %70 = sbr.rel (0) target = $region25
    $region24: #{tpu_custom_call.1} parent=1 // pred_region
      %s72 = ssub.s32 128, 128
      %73 = vsyncadd [#allocation4], %s72
      %s75 = sshll.u32 [#allocation7], 4
      %s76 = int_to_ptr.vmem [resolvable:$true] %s75
      %78 = dma.vmem_to_hbm [thread:$0]  %s76, 128, %s2, [#allocation4]
    $region25: #{tpu_custom_call.1} parent=1 // pred_fallthru
      _
    // Predicated region
    $region26: #{tpu_custom_call.1} parent=1 // pred_check
      _
    $region27: #{tpu_custom_call.1} parent=1 // pred_check_branch
      %80 = sbr.rel (0) target = $region29
    $region28: #{tpu_custom_call.1} parent=1 // pred_region
      %81 = dma.done [#allocation4], 128
    $region29: #{tpu_custom_call.1} parent=1 // pred_fallthru
      _
    %82 = vsyncpa [#allocation3], 1
    %83 = vsyncpa [#allocation6], 1
    %84 = vsyncpa [#allocation4], 1

</llo_original>
